<compile_context>
chip_gen: v6e
topology: v6e:2x2x1
jax: 0.10.0
libtpu: 0.0.40
codegen_flags: <defaults>
</compile_context>

<pallas_src>
import functools
import math

import jax
import jax.numpy as jnp
import numpy as np
from jax.experimental import pallas as pl
from jax.experimental.pallas import tpu as pltpu

LN_EPS = 1e-6
_MXU_DTYPE = jnp.bfloat16              # MXU operand dtype (fp32 accumulation)


# ---------------------------------------------------------------------------
# Generation-aware VMEM budget & tile candidates
# ---------------------------------------------------------------------------
def _vmem_capacity_bytes():
    try:
        info = pltpu.get_tpu_info()
        cap = getattr(info, "vmem_capacity_bytes", None)
        if cap:
            return int(cap)
    except Exception:
        pass
    return 64 * 1024 * 1024            # conservative fallback (v7x per-core VMEM)


_VMEM_CAP = _vmem_capacity_bytes()
_BIG_VMEM = _VMEM_CAP >= 96 * 1024 * 1024            # v5e / v6e (128 MiB per core)
_VMEM_LIMIT = min((_VMEM_CAP * 3) // 4, 100 * 1024 * 1024)


def _ts_candidates():
    return (512, 256, 128) if _BIG_VMEM else (256, 128)


def _tsk_candidates():
    return (1024, 512, 256, 128) if _BIG_VMEM else (512, 256, 128)


def _tn_candidates():
    return (4096, 3072, 2048, 1536, 1024, 512, 256, 128) if _BIG_VMEM \
        else (2048, 1536, 1024, 512, 256, 128)


def _pick_tile(dim, candidates):
    """Largest candidate that evenly divides dim, else the full dim."""
    for c in candidates:
        if dim >= c and dim % c == 0:
            return c
    return dim


def _qkv_seq_tile(S, K, D):
    """Sequence tile for the fused QKV kernel under the VMEM budget; the three
    double-buffered bf16 (K, D) weights dominate residency on v7x."""
    w_bytes = 3 * K * D * 2 * 2
    cands = [c for c in _ts_candidates() if S >= c and S % c == 0]
    if not cands:
        return S
    budget = int(_VMEM_LIMIT * 0.9)
    for ts in cands:
        act_bytes = 2 * ts * (K * 4 + 3 * D * 2 + 2 * D * 2)   # x f32, q/k/v + cos/sin bf16
        if w_bytes + act_bytes <= budget:
            return ts
    return cands[-1]


# ---------------------------------------------------------------------------
# pltpu.roll shift-convention probe (one tiny kernel, cached)
# ---------------------------------------------------------------------------
@functools.lru_cache(maxsize=None)
def _roll_is_numpy_convention():
    """True if pltpu.roll(x, 1, axis) places x[j-1] at position j (np.roll)."""
    def kern(x_ref, o_ref):
        o_ref[...] = pltpu.roll(x_ref[...], 1, 1)
    x = jnp.tile(jnp.arange(128, dtype=jnp.float32)[None, :], (8, 1))
    y = pl.pallas_call(kern, out_shape=jax.ShapeDtypeStruct((8, 128), jnp.float32))(x)
    return bool(float(y[0, 1]) == 0.0)


# ---------------------------------------------------------------------------
# In-kernel helpers (fp32 values resident in VMEM / vregs)
# ---------------------------------------------------------------------------
def _ln_affine(x, w, b, eps):
    """FP32 LayerNorm over the last dim with affine params (FP32_Layernorm)."""
    mean = jnp.mean(x, axis=-1, keepdims=True)
    xc = x - mean
    var = jnp.mean(xc * xc, axis=-1, keepdims=True)
    return xc * jax.lax.rsqrt(var + eps) * w.astype(jnp.float32) + b.astype(jnp.float32)


def _seg_ln(y, gamma, beta, indT, ind, inv_dh, eps):
    """Per-head LayerNorm on a lane-dense (TS, D=H*dh) fp32 tile.

    indT: (D, H) bf16 head indicator, ind: (H, D) bf16 (exact in bf16);
    gamma/beta: (1, D) fp32, head-tiled.  MXU accumulates in fp32.
    """
    yb = y.astype(_MXU_DTYPE)
    m = jnp.dot(yb, indT, preferred_element_type=jnp.float32) * inv_dh           # (TS, H)
    mb = jnp.dot(m.astype(_MXU_DTYPE), ind, preferred_element_type=jnp.float32)  # (TS, D)
    yc = y - mb
    var = jnp.dot((yc * yc).astype(_MXU_DTYPE), indT,
                  preferred_element_type=jnp.float32) * inv_dh
    vb = jnp.dot(var.astype(_MXU_DTYPE), ind, preferred_element_type=jnp.float32)
    return yc * jax.lax.rsqrt(vb + eps) * gamma.astype(jnp.float32) + beta.astype(jnp.float32)


def _rotate_half(y, parity, np_roll):
    """Interleaved-pair rotate-half via lane rotates (XLU) + parity select (VPU)."""
    n = y.shape[-1]
    if np_roll:
        nxt = pltpu.roll(y, n - 1, 1)   # y[..., j+1]
        prv = pltpu.roll(y, 1, 1)       # y[..., j-1]
    else:
        nxt = pltpu.roll(y, 1, 1)
        prv = pltpu.roll(y, n - 1, 1)
    return jnp.where(parity == 0, -nxt, prv)


def _rope(y, cos, sin, parity, np_roll):
    return y * cos + _rotate_half(y, parity, np_roll) * sin


def _gelu_tanh(y):
    c = math.sqrt(2.0 / math.pi)
    return 0.5 * y * (1.0 + jnp.tanh(c * (y + 0.044715 * y * y * y)))


# ---------------------------------------------------------------------------
# Kernel bodies
# ---------------------------------------------------------------------------
def _silu_linear_kernel(x_ref, w_ref, b_ref, o_ref):
    x = x_ref[...].astype(jnp.float32)
    x = x * jax.nn.sigmoid(x)                                   # FP32_SiLU
    y = jnp.dot(x.astype(_MXU_DTYPE), w_ref[...],
                preferred_element_type=jnp.float32) + b_ref[...].astype(jnp.float32)
    o_ref[...] = y.astype(o_ref.dtype)


def _ln_linear_kernel(x_ref, lnw_ref, lnb_ref, w_ref, b_ref, o_ref, *, eps, post_act):
    x = x_ref[0].astype(jnp.float32)
    xn = _ln_affine(x, lnw_ref[...], lnb_ref[...], eps)
    y = jnp.dot(xn.astype(_MXU_DTYPE), w_ref[...],
                preferred_element_type=jnp.float32) + b_ref[...].astype(jnp.float32)
    if post_act == "gelu_tanh":
        y = _gelu_tanh(y)
    o_ref[0] = y.astype(o_ref.dtype)


def _ln_skip_linear_kernel(x_ref, r_ref, lnw1_ref, lnb1_ref, lnw2_ref, lnb2_ref,
                           w1_ref, w2_ref, b_ref, o_ref, *, eps, inv_2d):
    """Joint LN over concat([x, res]) + Linear, without materializing the concat."""
    x1 = x_ref[0].astype(jnp.float32)
    x2 = r_ref[0].astype(jnp.float32)
    s = jnp.sum(x1, axis=-1, keepdims=True) + jnp.sum(x2, axis=-1, keepdims=True)
    mean = s * inv_2d
    c1 = x1 - mean
    c2 = x2 - mean
    var = (jnp.sum(c1 * c1, axis=-1, keepdims=True)
           + jnp.sum(c2 * c2, axis=-1, keepdims=True)) * inv_2d
    rstd = jax.lax.rsqrt(var + eps)
    n1 = c1 * rstd * lnw1_ref[...].astype(jnp.float32) + lnb1_ref[...].astype(jnp.float32)
    n2 = c2 * rstd * lnw2_ref[...].astype(jnp.float32) + lnb2_ref[...].astype(jnp.float32)
    y = (jnp.dot(n1.astype(_MXU_DTYPE), w1_ref[...], preferred_element_type=jnp.float32)
         + jnp.dot(n2.astype(_MXU_DTYPE), w2_ref[...], preferred_element_type=jnp.float32)
         + b_ref[...].astype(jnp.float32))
    o_ref[0] = y.astype(o_ref.dtype)


def _linear_res_kernel(x_ref, w_ref, b_ref, res_ref, o_ref, acc_ref):
    """out = residual + x @ W + b, K-tiled with fp32 accumulator (P3 pattern)."""
    kt = pl.program_id(3)

    @pl.when(kt == 0)
    def _init():
        acc_ref[...] = jnp.zeros_like(acc_ref)

    acc_ref[...] += jnp.dot(x_ref[0].astype(_MXU_DTYPE), w_ref[...],
                            preferred_element_type=jnp.float32)

    @pl.when(kt == pl.num_programs(3) - 1)
    def _finalize():
        y = acc_ref[...] + b_ref[...].astype(jnp.float32) + res_ref[0].astype(jnp.float32)
        o_ref[0] = y.astype(o_ref.dtype)


def _ln_qkv_rope_kernel(x_ref, lnw_ref, lnb_ref, shift_ref,
                        wq_ref, bq_ref, wk_ref, bk_ref, wv_ref, bv_ref,
                        gq_ref, bqn_ref, gk_ref, bkn_ref,
                        indT_ref, ind_ref, cos_ref, sin_ref,
                        q_ref, k_ref, v_ref, *, eps, inv_dh, np_roll):
    """Self-attention front end: LN + shift + Q/K/V proj + per-head LN + RoPE."""
    x = x_ref[0].astype(jnp.float32)
    xn = _ln_affine(x, lnw_ref[...], lnb_ref[...], eps) + shift_ref[0].astype(jnp.float32)
    xb = xn.astype(_MXU_DTYPE)
    cos = cos_ref[...].astype(jnp.float32)
    sin = sin_ref[...].astype(jnp.float32)
    indT = indT_ref[...]
    ind = ind_ref[...]
    parity = jax.lax.broadcasted_iota(jnp.int32, cos.shape, 1) % 2

    q = jnp.dot(xb, wq_ref[...], preferred_element_type=jnp.float32) + bq_ref[...].astype(jnp.float32)
    q = _rope(_seg_ln(q, gq_ref[...], bqn_ref[...], indT, ind, inv_dh, eps),
              cos, sin, parity, np_roll)
    q_ref[0] = q.astype(q_ref.dtype)

    k = jnp.dot(xb, wk_ref[...], preferred_element_type=jnp.float32) + bk_ref[...].astype(jnp.float32)
    k = _rope(_seg_ln(k, gk_ref[...], bkn_ref[...], indT, ind, inv_dh, eps),
              cos, sin, parity, np_roll)
    k_ref[0] = k.astype(k_ref.dtype)

    v = jnp.dot(xb, wv_ref[...], preferred_element_type=jnp.float32) + bv_ref[...].astype(jnp.float32)
    v_ref[0] = v.astype(v_ref.dtype)


def _ln_q_rope_kernel(x_ref, lnw_ref, lnb_ref, wq_ref, bq_ref, gq_ref, bqn_ref,
                      indT_ref, ind_ref, cos_ref, sin_ref, q_ref,
                      *, eps, inv_dh, np_roll):
    """Cross-attention q front end: LN(norm3) + q proj + per-head LN + RoPE."""
    x = x_ref[0].astype(jnp.float32)
    xn = _ln_affine(x, lnw_ref[...], lnb_ref[...], eps)
    q = jnp.dot(xn.astype(_MXU_DTYPE), wq_ref[...],
                preferred_element_type=jnp.float32) + bq_ref[...].astype(jnp.float32)
    q = _seg_ln(q, gq_ref[...], bqn_ref[...], indT_ref[...], ind_ref[...], inv_dh, eps)
    cos = cos_ref[...].astype(jnp.float32)
    sin = sin_ref[...].astype(jnp.float32)
    parity = jax.lax.broadcasted_iota(jnp.int32, cos.shape, 1) % 2
    q_ref[0] = _rope(q, cos, sin, parity, np_roll).astype(q_ref.dtype)


def _kv_segln_kernel(x_ref, wk_ref, bk_ref, wv_ref, bv_ref, gk_ref, bkn_ref,
                     indT_ref, ind_ref, k_ref, v_ref, *, eps, inv_dh):
    """Cross-attention kv front end: text proj, per-head LN on k only (no RoPE)."""
    x = x_ref[0].astype(_MXU_DTYPE)
    k = jnp.dot(x, wk_ref[...], preferred_element_type=jnp.float32) + bk_ref[...].astype(jnp.float32)
    k = _seg_ln(k, gk_ref[...], bkn_ref[...], indT_ref[...], ind_ref[...], inv_dh, eps)
    k_ref[0] = k.astype(k_ref.dtype)
    v = jnp.dot(x, wv_ref[...], preferred_element_type=jnp.float32) + bv_ref[...].astype(jnp.float32)
    v_ref[0] = v.astype(v_ref.dtype)


def _attn_single_kernel(q_ref, k_ref, v_ref, o_ref, *, num_heads, dh):
    """Plain per-head softmax attention for a single K tile (no online-softmax).
    q is pre-scaled by 1/sqrt(dh) upstream (folded into the q-norm affine)."""
    for h in range(num_heads):
        sl = pl.ds(h * dh, dh)
        q = q_ref[0, :, sl].astype(_MXU_DTYPE)
        k = k_ref[0, :, sl].astype(_MXU_DTYPE)
        v = v_ref[0, :, sl].astype(_MXU_DTYPE)
        s = jax.lax.dot_general(q, k, (((1,), (1,)), ((), ())),
                                preferred_element_type=jnp.float32)
        m = jnp.max(s, axis=-1, keepdims=True)
        p = jnp.exp(s - m)
        l = jnp.sum(p, axis=-1, keepdims=True)
        o = jax.lax.dot_general(p.astype(_MXU_DTYPE), v, (((1,), (0,)), ((), ())),
                                preferred_element_type=jnp.float32)
        o_ref[0, :, sl] = (o * pl.reciprocal(l, approx=True)).astype(o_ref.dtype)


def _flash_attn_kernel(q_ref, k_ref, v_ref, o_ref, m_ref, l_ref, acc_ref,
                       *, num_heads, dh):
    """Flash-style online-softmax attention; heads packed along lanes (D = H*dh).
    q is pre-scaled by 1/sqrt(dh) upstream."""
    kt = pl.program_id(2)

    @pl.when(kt == 0)
    def _init():
        m_ref[...] = jnp.full_like(m_ref, -1e30)
        l_ref[...] = jnp.zeros_like(l_ref)
        acc_ref[...] = jnp.zeros_like(acc_ref)

    for h in range(num_heads):
        sl = pl.ds(h * dh, dh)
        q = q_ref[0, :, sl].astype(_MXU_DTYPE)
        k = k_ref[0, :, sl].astype(_MXU_DTYPE)
        v = v_ref[0, :, sl].astype(_MXU_DTYPE)
        s = jax.lax.dot_general(q, k, (((1,), (1,)), ((), ())),
                                preferred_element_type=jnp.float32)
        m_prev = m_ref[h]
        m_new = jnp.maximum(m_prev, jnp.max(s, axis=-1, keepdims=True))
        alpha = jnp.exp(m_prev - m_new)
        p = jnp.exp(s - m_new)
        l_ref[h] = alpha * l_ref[h] + jnp.sum(p, axis=-1, keepdims=True)
        acc_ref[h] = alpha * acc_ref[h] + jax.lax.dot_general(
            p.astype(_MXU_DTYPE), v, (((1,), (0,)), ((), ())),
            preferred_element_type=jnp.float32)
        m_ref[h] = m_new

    @pl.when(kt == pl.num_programs(2) - 1)
    def _finalize():
        for h in range(num_heads):
            inv = pl.reciprocal(l_ref[h], approx=True)
            o_ref[0, :, pl.ds(h * dh, dh)] = (acc_ref[h] * inv).astype(o_ref.dtype)


# ---------------------------------------------------------------------------
# Wrappers (pallas_call + BlockSpecs)
# ---------------------------------------------------------------------------
def silu_linear(x, p):
    dout = p["w"].shape[1]
    return pl.pallas_call(
        _silu_linear_kernel,
        out_shape=jax.ShapeDtypeStruct((x.shape[0], dout), x.dtype),
    )(x, p["w"].astype(_MXU_DTYPE), p["b"].reshape(1, dout))


def ln_linear(x, ln_p, lin_p, post_act=None, out_dtype=None, eps=LN_EPS):
    B, S, K = x.shape
    N = lin_p["w"].shape[1]
    TS = _pick_tile(S, _ts_candidates())
    TN = _pick_tile(N, _tn_candidates()) if N > 2048 else N
    grid = (B, S // TS, N // TN)
    out_dtype = x.dtype if out_dtype is None else out_dtype
    c2 = lambda b, i, j: (0, 0)
    return pl.pallas_call(
        functools.partial(_ln_linear_kernel, eps=eps, post_act=post_act),
        grid=grid,
        in_specs=[
            pl.BlockSpec((1, TS, K), lambda b, i, j: (b, i, 0)),
            pl.BlockSpec((1, K), c2),
            pl.BlockSpec((1, K), c2),
            pl.BlockSpec((K, TN), lambda b, i, j: (0, j)),
            pl.BlockSpec((1, TN), lambda b, i, j: (0, j)),
        ],
        out_specs=pl.BlockSpec((1, TS, TN), lambda b, i, j: (b, i, j)),
        out_shape=jax.ShapeDtypeStruct((B, S, N), out_dtype),
        compiler_params=pltpu.CompilerParams(
            dimension_semantics=("parallel", "parallel", "parallel"),
            vmem_limit_bytes=_VMEM_LIMIT),
    )(x, ln_p["w"].reshape(1, K), ln_p["b"].reshape(1, K),
      lin_p["w"].astype(_MXU_DTYPE), lin_p["b"].reshape(1, N))


def ln_linear_skip(x, res, ln_p, lin_p, eps=LN_EPS):
    """skip_connection path: LN(concat([x,res])) @ W + b without the HBM concat."""
    B, S, Dm = x.shape
    N = lin_p["w"].shape[1]
    TS = _pick_tile(S, _ts_candidates())
    TN = _pick_tile(N, _tn_candidates()) if N > 2048 else N
    grid = (B, S // TS, N // TN)
    lnw, lnb = ln_p["w"], ln_p["b"]
    w = lin_p["w"].astype(_MXU_DTYPE)
    c2 = lambda b, i, j: (0, 0)
    xmap = lambda b, i, j: (b, i, 0)
    return pl.pallas_call(
        functools.partial(_ln_skip_linear_kernel, eps=eps, inv_2d=1.0 / (2 * Dm)),
        grid=grid,
        in_specs=[
            pl.BlockSpec((1, TS, Dm), xmap),
            pl.BlockSpec((1, TS, Dm), xmap),
            pl.BlockSpec((1, Dm), c2), pl.BlockSpec((1, Dm), c2),
            pl.BlockSpec((1, Dm), c2), pl.BlockSpec((1, Dm), c2),
            pl.BlockSpec((Dm, TN), lambda b, i, j: (0, j)),
            pl.BlockSpec((Dm, TN), lambda b, i, j: (0, j)),
            pl.BlockSpec((1, TN), lambda b, i, j: (0, j)),
        ],
        out_specs=pl.BlockSpec((1, TS, TN), lambda b, i, j: (b, i, j)),
        out_shape=jax.ShapeDtypeStruct((B, S, N), x.dtype),
        compiler_params=pltpu.CompilerParams(
            dimension_semantics=("parallel", "parallel", "parallel"),
            vmem_limit_bytes=_VMEM_LIMIT),
    )(x, res,
      lnw[:Dm].reshape(1, Dm), lnb[:Dm].reshape(1, Dm),
      lnw[Dm:].reshape(1, Dm), lnb[Dm:].reshape(1, Dm),
      w[:Dm], w[Dm:], lin_p["b"].reshape(1, N))


def linear_residual(x, lin_p, res):
    """out = res + x @ W + b  (M/N/K tiled matmul with fp32 accumulator)."""
    B, S, K = x.shape
    N = lin_p["w"].shape[1]
    TS = _pick_tile(S, _ts_candidates())
    TN = _pick_tile(N, _tn_candidates()) if N > 2048 else N
    TK = _pick_tile(K, (2048, 1024, 512)) if K > 2048 else K
    grid = (B, S // TS, N // TN, K // TK)
    return pl.pallas_call(
        _linear_res_kernel,
        grid=grid,
        in_specs=[
            pl.BlockSpec((1, TS, TK), lambda b, i, j, kt: (b, i, kt)),
            pl.BlockSpec((TK, TN), lambda b, i, j, kt: (kt, j)),
            pl.BlockSpec((1, TN), lambda b, i, j, kt: (0, j)),
            pl.BlockSpec((1, TS, TN), lambda b, i, j, kt: (b, i, j)),
        ],
        out_specs=pl.BlockSpec((1, TS, TN), lambda b, i, j, kt: (b, i, j)),
        out_shape=jax.ShapeDtypeStruct((B, S, N), res.dtype),
        scratch_shapes=[pltpu.VMEM((TS, TN), jnp.float32)],
        compiler_params=pltpu.CompilerParams(
            dimension_semantics=("parallel", "parallel", "parallel", "arbitrary"),
            vmem_limit_bytes=_VMEM_LIMIT),
    )(x, lin_p["w"].astype(_MXU_DTYPE), lin_p["b"].reshape(1, N), res)


def ln_qkv_rope(x, ln_p, shift, q_p, k_p, v_p, qn_p, kn_p, consts, cos, sin,
                num_heads, q_scale, eps=LN_EPS):
    B, S, K = x.shape
    D = q_p["w"].shape[1]
    dh = D // num_heads
    TS = _qkv_seq_tile(S, K, D)
    grid = (B, S // TS)
    c2 = lambda b, i: (0, 0)
    out_spec = pl.BlockSpec((1, TS, D), lambda b, i: (b, i, 0))
    out_sds = jax.ShapeDtypeStruct((B, S, D), jnp.bfloat16)
    # Fold the 1/sqrt(dh) softmax scale into the q-norm affine (LN output is
    # invariant to pre-scaling its input; RoPE is linear), so the attention
    # kernel needs no per-score multiply.
    gq = (jnp.tile(qn_p["w"], num_heads) * q_scale).reshape(1, D)
    bq = (jnp.tile(qn_p["b"], num_heads) * q_scale).reshape(1, D)
    gk = jnp.tile(kn_p["w"], num_heads).reshape(1, D)
    bk = jnp.tile(kn_p["b"], num_heads).reshape(1, D)
    q, k, v = pl.pallas_call(
        functools.partial(_ln_qkv_rope_kernel, eps=eps, inv_dh=1.0 / dh,
                          np_roll=_roll_is_numpy_convention()),
        grid=grid,
        in_specs=[
            pl.BlockSpec((1, TS, K), lambda b, i: (b, i, 0)),   # x
            pl.BlockSpec((1, K), c2), pl.BlockSpec((1, K), c2),  # ln w/b
            pl.BlockSpec((1, 1, K), lambda b, i: (b, 0, 0)),    # shift
            pl.BlockSpec((K, D), c2), pl.BlockSpec((1, D), c2),  # Wq, bq
            pl.BlockSpec((K, D), c2), pl.BlockSpec((1, D), c2),  # Wk, bk
            pl.BlockSpec((K, D), c2), pl.BlockSpec((1, D), c2),  # Wv, bv
            pl.BlockSpec((1, D), c2), pl.BlockSpec((1, D), c2),  # q-norm gamma/beta (scaled)
            pl.BlockSpec((1, D), c2), pl.BlockSpec((1, D), c2),  # k-norm gamma/beta
            pl.BlockSpec((D, num_heads), c2),                   # indT (bf16)
            pl.BlockSpec((num_heads, D), c2),                   # ind (bf16)
            pl.BlockSpec((TS, D), lambda b, i: (i, 0)),         # cos (bf16, head-tiled)
            pl.BlockSpec((TS, D), lambda b, i: (i, 0)),         # sin
        ],
        out_specs=(out_spec, out_spec, out_spec),
        out_shape=(out_sds, out_sds, out_sds),
        compiler_params=pltpu.CompilerParams(
            dimension_semantics=("parallel", "parallel"),
            vmem_limit_bytes=_VMEM_LIMIT),
    )(x, ln_p["w"].reshape(1, K), ln_p["b"].reshape(1, K), shift,
      q_p["w"].astype(_MXU_DTYPE), q_p["b"].reshape(1, D),
      k_p["w"].astype(_MXU_DTYPE), k_p["b"].reshape(1, D),
      v_p["w"].astype(_MXU_DTYPE), v_p["b"].reshape(1, D),
      gq, bq, gk, bk,
      consts["indT"], consts["ind"], cos, sin)
    return q, k, v


def ln_q_rope(x, ln_p, q_p, qn_p, consts, cos, sin, num_heads, q_scale, eps=LN_EPS):
    B, S, K = x.shape
    D = q_p["w"].shape[1]
    dh = D // num_heads
    TS = _pick_tile(S, _ts_candidates())
    grid = (B, S // TS)
    c2 = lambda b, i: (0, 0)
    gq = (jnp.tile(qn_p["w"], num_heads) * q_scale).reshape(1, D)
    bq = (jnp.tile(qn_p["b"], num_heads) * q_scale).reshape(1, D)
    return pl.pallas_call(
        functools.partial(_ln_q_rope_kernel, eps=eps, inv_dh=1.0 / dh,
                          np_roll=_roll_is_numpy_convention()),
        grid=grid,
        in_specs=[
            pl.BlockSpec((1, TS, K), lambda b, i: (b, i, 0)),
            pl.BlockSpec((1, K), c2), pl.BlockSpec((1, K), c2),
            pl.BlockSpec((K, D), c2), pl.BlockSpec((1, D), c2),
            pl.BlockSpec((1, D), c2), pl.BlockSpec((1, D), c2),
            pl.BlockSpec((D, num_heads), c2),
            pl.BlockSpec((num_heads, D), c2),
            pl.BlockSpec((TS, D), lambda b, i: (i, 0)),
            pl.BlockSpec((TS, D), lambda b, i: (i, 0)),
        ],
        out_specs=pl.BlockSpec((1, TS, D), lambda b, i: (b, i, 0)),
        out_shape=jax.ShapeDtypeStruct((B, S, D), jnp.bfloat16),
        compiler_params=pltpu.CompilerParams(
            dimension_semantics=("parallel", "parallel"),
            vmem_limit_bytes=_VMEM_LIMIT),
    )(x, ln_p["w"].reshape(1, K), ln_p["b"].reshape(1, K),
      q_p["w"].astype(_MXU_DTYPE), q_p["b"].reshape(1, D),
      gq, bq, consts["indT"], consts["ind"], cos, sin)


def kv_proj_segln(x, k_p, v_p, kn_p, consts, num_heads, eps=LN_EPS):
    B, S, K = x.shape
    D = k_p["w"].shape[1]
    dh = D // num_heads
    TS = _pick_tile(S, _ts_candidates())
    grid = (B, S // TS)
    c2 = lambda b, i: (0, 0)
    out_spec = pl.BlockSpec((1, TS, D), lambda b, i: (b, i, 0))
    out_sds = jax.ShapeDtypeStruct((B, S, D), jnp.bfloat16)
    k, v = pl.pallas_call(
        functools.partial(_kv_segln_kernel, eps=eps, inv_dh=1.0 / dh),
        grid=grid,
        in_specs=[
            pl.BlockSpec((1, TS, K), lambda b, i: (b, i, 0)),
            pl.BlockSpec((K, D), c2), pl.BlockSpec((1, D), c2),
            pl.BlockSpec((K, D), c2), pl.BlockSpec((1, D), c2),
            pl.BlockSpec((1, D), c2), pl.BlockSpec((1, D), c2),
            pl.BlockSpec((D, num_heads), c2),
            pl.BlockSpec((num_heads, D), c2),
        ],
        out_specs=(out_spec, out_spec),
        out_shape=(out_sds, out_sds),
        compiler_params=pltpu.CompilerParams(
            dimension_semantics=("parallel", "parallel"),
            vmem_limit_bytes=_VMEM_LIMIT),
    )(x, k_p["w"].astype(_MXU_DTYPE), k_p["b"].reshape(1, D),
      v_p["w"].astype(_MXU_DTYPE), v_p["b"].reshape(1, D),
      jnp.tile(kn_p["w"], num_heads).reshape(1, D),
      jnp.tile(kn_p["b"], num_heads).reshape(1, D),
      consts["indT"], consts["ind"])
    return k, v


def flash_attention(q, k, v, num_heads, tsq=None, tsk=None):
    """q is expected pre-scaled by 1/sqrt(dh) (folded into q-norm affine)."""
    B, Sq, D = q.shape
    Sk = k.shape[1]
    dh = D // num_heads
    TSq = tsq if tsq is not None else _pick_tile(Sq, _ts_candidates())
    TSk = tsk if tsk is not None else _pick_tile(Sk, _tsk_candidates())

    if Sk == TSk:
        # Single K tile (text cross-attn / short sequences): plain softmax,
        # no online-softmax machinery.
        return pl.pallas_call(
            functools.partial(_attn_single_kernel, num_heads=num_heads, dh=dh),
            grid=(B, Sq // TSq),
            in_specs=[
                pl.BlockSpec((1, TSq, D), lambda b, i: (b, i, 0)),
                pl.BlockSpec((1, TSk, D), lambda b, i: (b, 0, 0)),
                pl.BlockSpec((1, TSk, D), lambda b, i: (b, 0, 0)),
            ],
            out_specs=pl.BlockSpec((1, TSq, D), lambda b, i: (b, i, 0)),
            out_shape=jax.ShapeDtypeStruct((B, Sq, D), jnp.bfloat16),
            compiler_params=pltpu.CompilerParams(
                dimension_semantics=("parallel", "parallel"),
                vmem_limit_bytes=_VMEM_LIMIT),
        )(q, k, v)

    grid = (B, Sq // TSq, Sk // TSk)
    return pl.pallas_call(
        functools.partial(_flash_attn_kernel, num_heads=num_heads, dh=dh),
        grid=grid,
        in_specs=[
            pl.BlockSpec((1, TSq, D), lambda b, i, j: (b, i, 0)),
            pl.BlockSpec((1, TSk, D), lambda b, i, j: (b, j, 0)),
            pl.BlockSpec((1, TSk, D), lambda b, i, j: (b, j, 0)),
        ],
        out_specs=pl.BlockSpec((1, TSq, D), lambda b, i, j: (b, i, 0)),
        out_shape=jax.ShapeDtypeStruct((B, Sq, D), jnp.bfloat16),
        scratch_shapes=[
            pltpu.VMEM((num_heads, TSq, 1), jnp.float32),   # running max
            pltpu.VMEM((num_heads, TSq, 1), jnp.float32),   # running denom
            pltpu.VMEM((num_heads, TSq, dh), jnp.float32),  # running output
        ],
        compiler_params=pltpu.CompilerParams(
            dimension_semantics=("parallel", "parallel", "arbitrary"),
            vmem_limit_bytes=_VMEM_LIMIT),
    )(q, k, v)


# ---------------------------------------------------------------------------
# Full HunyuanDiTBlock forward
# ---------------------------------------------------------------------------
def make_head_constants(num_heads, dh):
    """Lane-dense per-head indicator matrices (bf16-exact 0/1 entries)."""
    ind = np.kron(np.eye(num_heads, dtype=np.float32),
                  np.ones((1, dh), dtype=np.float32))                       # (H, D)
    return {"ind": jnp.asarray(ind, dtype=jnp.bfloat16),
            "indT": jnp.asarray(ind.T, dtype=jnp.bfloat16)}


def hunyuan_dit_block(params, hidden_states, condition_emb, text_emb,
                      freqs_cos, freqs_sin, residual=None):
    H = params["num_heads"]
    consts = params["head_consts"]
    D = params["attn1_q"]["w"].shape[1]
    dh = D // H
    q_scale = 1.0 / math.sqrt(dh)

    # Head-tiled cos/sin, bf16 to halve the per-step DMA payload.
    # TODO(synk): pass (S, dh) and broadcast per head in-kernel to cut it by 2H x.
    cosD = jnp.tile(freqs_cos, (1, H)).astype(jnp.bfloat16)
    sinD = jnp.tile(freqs_sin, (1, H)).astype(jnp.bfloat16)

    # optional skip connection (skip_connection=True) -- no HBM concatenate
    if params["skip_linear"] is not None:
        hidden_states = ln_linear_skip(hidden_states, residual,
                                       params["skip_norm"], params["skip_linear"])

    # modulation = Linear(SiLU(condition_emb)).unsqueeze(1)
    shift_msa = silu_linear(condition_emb, params["mod"])[:, None, :]

    # --- self attention: LN1 + shift + QKV + rota1 (per-head LN + RoPE) fused ---
    q, k, v = ln_qkv_rope(hidden_states, params["norm1"], shift_msa,
                          params["attn1_q"], params["attn1_k"], params["attn1_v"],
                          params["rota1_q_norm"], params["rota1_k_norm"],
                          consts, cosD, sinD, H, q_scale)
    attn = flash_attention(q, k, v, H)
    hidden_states = linear_residual(attn, params["attn1_o"], hidden_states)

    # --- cross attention: LN3 + q proj + rota2-q fused; text kv proj + k-norm fused ---
    q = ln_q_rope(hidden_states, params["norm3"], params["attn2_q"],
                  params["rota2_q_norm"], consts, cosD, sinD, H, q_scale)
    k, v = kv_proj_segln(text_emb, params["attn2_k"], params["attn2_v"],
                         params["rota2_k_norm"], consts, H)
    attn = flash_attention(q, k, v, H)
    hidden_states = linear_residual(attn, params["attn2_o"], hidden_states)

    # --- MLP: LN2 + mlp1 + GELU(tanh) fused, then mlp2 + residual fused ---
    h = ln_linear(hidden_states, params["norm2"], params["mlp1"],
                  post_act="gelu_tanh", out_dtype=jnp.bfloat16)
    hidden_states = linear_residual(h, params["mlp2"], hidden_states)
    return hidden_states


# ---------------------------------------------------------------------------
# Pure-JAX fp32 reference (for correctness check)
# ---------------------------------------------------------------------------
def _split_heads(x, num_heads):
    B, S, D = x.shape
    dh = D // num_heads
    return jnp.transpose(x.reshape(B, S, num_heads, dh), (0, 2, 1, 3))


def _merge_heads(x):
    B, H, S, Dh = x.shape
    return jnp.transpose(x, (0, 2, 1, 3)).reshape(B, S, H * Dh)


def _ref_ln(x, w, b, eps=LN_EPS):
    x = x.astype(jnp.float32)
    mean = jnp.mean(x, -1, keepdims=True)
    var = jnp.mean((x - mean) ** 2, -1, keepdims=True)
    return (x - mean) / jnp.sqrt(var + eps) * w + b


def _ref_rotate_half(x):
    xr = x[..., 0::2]
    xi = x[..., 1::2]
    return jnp.stack([-xi, xr], axis=-1).reshape(x.shape)


def _ref_rope(x, cos, sin):
    return x * cos + _ref_rotate_half(x) * sin


def _ref_attn(q, k, v):
    scale = 1.0 / math.sqrt(q.shape[-1])
    s = jnp.einsum("bhqd,bhkd->bhqk", q, k) * scale
    return jnp.einsum("bhqk,bhkd->bhqd", jax.nn.softmax(s, axis=-1), v)


def _ref_lin(x, p, pre_act=None, post_act=None):
    if pre_act == "silu":
        x = x * jax.nn.sigmoid(x)
    y = x @ p["w"] + p["b"]
    if post_act == "gelu_tanh":
        c = math.sqrt(2.0 / math.pi)
        y = 0.5 * y * (1.0 + jnp.tanh(c * (y + 0.044715 * y ** 3)))
    return y


def hunyuan_ref(params, hidden_states, condition_emb, text_emb, freqs_cos, freqs_sin,
                residual=None):
    H = params["num_heads"]
    if params.get("skip_linear") is not None:
        cat = jnp.concatenate([hidden_states, residual], axis=-1)
        hidden_states = _ref_lin(
            _ref_ln(cat, params["skip_norm"]["w"], params["skip_norm"]["b"]),
            params["skip_linear"])

    shift_msa = _ref_lin(condition_emb, params["mod"], pre_act="silu")[:, None, :]

    attn_in = _ref_ln(hidden_states, params["norm1"]["w"], params["norm1"]["b"]) + shift_msa
    q = _split_heads(_ref_lin(attn_in, params["attn1_q"]), H)
    k = _split_heads(_ref_lin(attn_in, params["attn1_k"]), H)
    v = _split_heads(_ref_lin(attn_in, params["attn1_v"]), H)
    q = _ref_rope(_ref_ln(q, params["rota1_q_norm"]["w"], params["rota1_q_norm"]["b"]),
                  freqs_cos, freqs_sin)
    k = _ref_rope(_ref_ln(k, params["rota1_k_norm"]["w"], params["rota1_k_norm"]["b"]),
                  freqs_cos, freqs_sin)
    hidden_states = hidden_states + _ref_lin(_merge_heads(_ref_attn(q, k, v)), params["attn1_o"])

    attn_in = _ref_ln(hidden_states, params["norm3"]["w"], params["norm3"]["b"])
    q = _split_heads(_ref_lin(attn_in, params["attn2_q"]), H)
    k = _split_heads(_ref_lin(text_emb, params["attn2_k"]), H)
    v = _split_heads(_ref_lin(text_emb, params["attn2_v"]), H)
    q = _ref_rope(_ref_ln(q, params["rota2_q_norm"]["w"], params["rota2_q_norm"]["b"]),
                  freqs_cos, freqs_sin)
    k = _ref_ln(k, params["rota2_k_norm"]["w"], params["rota2_k_norm"]["b"])
    hidden_states = hidden_states + _ref_lin(_merge_heads(_ref_attn(q, k, v)), params["attn2_o"])

    mlp_in = _ref_ln(hidden_states, params["norm2"]["w"], params["norm2"]["b"])
    h = _ref_lin(_ref_lin(mlp_in, params["mlp1"], post_act="gelu_tanh"), params["mlp2"])
    return hidden_states + h


# ---------------------------------------------------------------------------
# Deterministic parameter construction
# ---------------------------------------------------------------------------
def init_params(key, hidden_dim, condition_dim, num_heads, mlp_ratio, text_dim,
                skip_connection=False):
    dh = hidden_dim // num_heads
    mlp_dim = int(hidden_dim * mlp_ratio)
    keys = iter(jax.random.split(key, 32))

    def lin(din, dout, scale=0.05):
        k1, k2 = jax.random.split(next(keys))
        return {"w": scale * jax.random.normal(k1, (din, dout), jnp.float32),
                "b": scale * jax.random.normal(k2, (dout,), jnp.float32)}

    def ln(d):
        k1, k2 = jax.random.split(next(keys))
        return {"w": 1.0 + 0.05 * jax.random.normal(k1, (d,), jnp.float32),
                "b": 0.05 * jax.random.normal(k2, (d,), jnp.float32)}

    params = {
        "num_heads": num_heads,
        "head_consts": make_head_constants(num_heads, dh),
        "norm1": ln(hidden_dim),
        "norm2": ln(hidden_dim),
        "norm3": ln(hidden_dim),
        "rota1_q_norm": ln(dh),
        "rota1_k_norm": ln(dh),
        "rota2_q_norm": ln(dh),
        "rota2_k_norm": ln(dh),
        "attn1_q": lin(hidden_dim, hidden_dim),
        "attn1_k": lin(hidden_dim, hidden_dim),
        "attn1_v": lin(hidden_dim, hidden_dim),
        "attn1_o": lin(hidden_dim, hidden_dim),
        "attn2_q": lin(hidden_dim, hidden_dim),
        "attn2_k": lin(text_dim, hidden_dim),
        "attn2_v": lin(text_dim, hidden_dim),
        "attn2_o": lin(hidden_dim, hidden_dim),
        "mod": lin(condition_dim, hidden_dim),
        "mlp1": lin(hidden_dim, mlp_dim),
        "mlp2": lin(mlp_dim, hidden_dim),
    }
    if skip_connection:
        params["skip_norm"] = ln(hidden_dim * 2)
        params["skip_linear"] = lin(hidden_dim * 2, hidden_dim)
    else:
        params["skip_norm"] = None
        params["skip_linear"] = None
    return params


if __name__ == "__main__":
    B, S_img, S_text = 2, 64, 32
    hidden_dim, condition_dim, num_heads, text_dim = 512, 256, 4, 256
    mlp_ratio = 4.3637
    dh = hidden_dim // num_heads

    key = jax.random.PRNGKey(0)
    kp, kx, kc, kt, kr = jax.random.split(key, 5)
    params = init_params(kp, hidden_dim, condition_dim, num_heads, mlp_ratio, text_dim)

    hidden_states = jax.random.normal(kx, (B, S_img, hidden_dim), jnp.float32)
    condition_emb = jax.random.normal(kc, (B, condition_dim), jnp.float32)
    text_emb = jax.random.normal(kt, (B, S_text, text_dim), jnp.float32)

    # freqs_cis_img = (cos, sin), each (S_img, head_dim), interleaved-pair layout.
    pos = jnp.arange(S_img, dtype=jnp.float32)[:, None]
    inv_freq = 1.0 / (10000.0 ** (jnp.arange(0, dh, 2, dtype=jnp.float32) / dh))
    ang = jnp.repeat(pos * inv_freq[None, :], 2, axis=-1)     # (S_img, dh)
    freqs_cos, freqs_sin = jnp.cos(ang), jnp.sin(ang)

    # --- 1) full block, default config (skip_connection=False) ---
    out = hunyuan_dit_block(params, hidden_states, condition_emb, text_emb,
                            freqs_cos, freqs_sin)
    out = jax.block_until_ready(out)
    ref = hunyuan_ref(params, hidden_states, condition_emb, text_emb,
                      freqs_cos, freqs_sin)
    assert out.shape == (B, S_img, hidden_dim), out.shape
    # bf16 MXU operands / cos-sin / seg-LN (vs fp32 reference) => loosened tolerance.
    assert jnp.allclose(out, ref, atol=5e-2, rtol=5e-2), \
        float(jnp.max(jnp.abs(out - ref)))

    # --- 2) exercise the multi-K-tile online-softmax flash path directly ---
    kq2, kk2, kv2 = jax.random.split(jax.random.PRNGKey(1), 3)
    S_f = 128
    q_f = jax.random.normal(kq2, (B, S_f, hidden_dim), jnp.float32)
    k_f = jax.random.normal(kk2, (B, S_f, hidden_dim), jnp.float32)
    v_f = jax.random.normal(kv2, (B, S_f, hidden_dim), jnp.float32)
    scale = 1.0 / math.sqrt(dh)
    out_f = flash_attention((q_f * scale).astype(jnp.bfloat16),
                            k_f.astype(jnp.bfloat16), v_f.astype(jnp.bfloat16),
                            num_heads, tsq=64, tsk=32)
    out_f = jax.block_until_ready(out_f)
    ref_f = _merge_heads(_ref_attn(_split_heads(q_f, num_heads),
                                   _split_heads(k_f, num_heads),
                                   _split_heads(v_f, num_heads)))
    assert jnp.allclose(out_f.astype(jnp.float32), ref_f, atol=5e-2, rtol=5e-2), \
        float(jnp.max(jnp.abs(out_f.astype(jnp.float32) - ref_f)))

    # --- 3) skip_connection=True path (no-concat fused skip LN + linear) ---
    params_skip = init_params(jax.random.PRNGKey(2), hidden_dim, condition_dim,
                              num_heads, mlp_ratio, text_dim, skip_connection=True)
    residual = jax.random.normal(kr, (B, S_img, hidden_dim), jnp.float32)
    out_s = hunyuan_dit_block(params_skip, hidden_states, condition_emb, text_emb,
                              freqs_cos, freqs_sin, residual=residual)
    out_s = jax.block_until_ready(out_s)
    ref_s = hunyuan_ref(params_skip, hidden_states, condition_emb, text_emb,
                        freqs_cos, freqs_sin, residual=residual)
    assert jnp.allclose(out_s, ref_s, atol=5e-2, rtol=5e-2), \
        float(jnp.max(jnp.abs(out_s - ref_s)))

    print("KERNEL_OK")
</pallas_src>

<mosaic_0001>
module attributes {stable_mosaic.version = 11 : i64} {
  func.func @_silu_linear_kernel(%arg0: memref<2x256xf32, #tpu.memory_space<vmem>>, %arg1: memref<256x512xbf16, #tpu.memory_space<vmem>>, %arg2: memref<1x512xf32, #tpu.memory_space<vmem>>, %arg3: memref<2x512xf32, #tpu.memory_space<vmem>>) attributes {dimension_semantics = [], scalar_prefetch = 0 : i64, scratch_operands = 0 : i64, tpu.core_type = #tpu.core_type<tc>} {
    %c0 = arith.constant 0 : index
    %c0_0 = arith.constant 0 : index
    %0 = vector.load %arg0[%c0, %c0_0] : memref<2x256xf32, #tpu.memory_space<vmem>>, vector<2x256xf32>
    %1 = arith.negf %0 : vector<2x256xf32>
    %2 = math.exp %1 : vector<2x256xf32>
    %cst = arith.constant 1.000000e+00 : f32
    %3 = vector.broadcast %cst : f32 to vector<2x256xf32>
    %4 = arith.addf %3, %2 : vector<2x256xf32>
    %5 = arith.divf %3, %4 : vector<2x256xf32>
    %6 = arith.mulf %0, %5 : vector<2x256xf32>
    %7 = arith.truncf %6 : vector<2x256xf32> to vector<2x256xbf16>
    %c0_1 = arith.constant 0 : index
    %c0_2 = arith.constant 0 : index
    %8 = vector.load %arg1[%c0_1, %c0_2] : memref<256x512xbf16, #tpu.memory_space<vmem>>, vector<256x512xbf16>
    %cst_3 = arith.constant dense<0.000000e+00> : vector<2x512xf32>
    %9 = tpu.matmul %7, %8, %cst_3 {dimension_numbers = #tpu.dot_dimension_numbers<[1], [0], [0], [1], [0, 0, 1, 1], [], []>} : vector<2x256xbf16>, vector<256x512xbf16>, vector<2x512xf32> -> vector<2x512xf32>
    %c0_4 = arith.constant 0 : index
    %c0_5 = arith.constant 0 : index
    %10 = vector.load %arg2[%c0_4, %c0_5] : memref<1x512xf32, #tpu.memory_space<vmem>>, vector<1x512xf32>
    %11 = vector.broadcast %10 : vector<1x512xf32> to vector<2x512xf32>
    %12 = arith.addf %9, %11 : vector<2x512xf32>
    %c0_6 = arith.constant 0 : index
    %c0_7 = arith.constant 0 : index
    %13 = vector.load %arg3[%c0_6, %c0_7] : memref<2x512xf32, #tpu.memory_space<vmem>>, vector<2x512xf32>
    tpu.vector_store %arg3[%c0_6, %c0_7], %12 {strides = array<i32>} : memref<2x512xf32, #tpu.memory_space<vmem>>, vector<2x512xf32>,
    return
  }
}

</mosaic_0001>

<llo_original>
// kernel: tpu_custom_call.1
$region0: #{tpu_custom_call.1}
  #allocation0 [shape = 'u32[]', space=smem, size = 0x4, offset = 0x4, fixed_abs, tag = 'smem constant byte address 0x4 - core index']
  #allocation1 [shape = 'u32[144,128]{1,0:T(1,128)}', space=vmem, size = 0x12000, scoped, tag = 'internal scratch']
  %s0 = inlined_call_operand.hbm [shape: f32[2,256], index: 0, kind: input, shape index: {}]
  %s1 = inlined_call_operand.hbm [shape: bf16[256,512], index: 1, kind: input, shape index: {}]
  %s2 = inlined_call_operand.hbm [shape: f32[1,512], index: 2, kind: input, shape index: {}]
  %s3 = inlined_call_operand.hbm [shape: f32[2,512], index: 3, kind: output, shape index: {}]
  %s4 = sld [smem:[#allocation0]]
  $region34: #{tpu_custom_call.1} parent=0
    _
  %s6 = ssub.s32 1, %s4
  %s7 = scalar_select 0, %s6, %s4
  $region1: #{tpu_custom_call.1} parent=0
    #allocation2 [shape = 'u8[2048]{0}', space=vmem, size = 0x800, scoped, tag = 'input window, operand 0, single buffered']
    #allocation3 [shape = 's32[1]{0}', space=sflag, size = 0x4, scoped, tag = 'scoped memory for tpu_custom_call.1']
    #allocation4 [shape = 's32[1]{0}', space=sflag, size = 0x4, scoped, tag = 'scoped memory for tpu_custom_call.1']
    #allocation5 [shape = 'u8[262144]{0}', space=vmem, size = 0x40000, scoped, tag = 'input window, operand 1, single buffered']
    #allocation6 [shape = 's32[1]{0}', space=sflag, size = 0x4, scoped, tag = 'scoped memory for tpu_custom_call.1']
    #allocation7 [shape = 'u8[2048]{0}', space=vmem, size = 0x800, scoped, tag = 'input window, operand 2, single buffered']
    #allocation8 [shape = 'u8[4096]{0}', space=vmem, size = 0x1000, scoped, tag = 'output window, operand 0, single buffered']
    %8 = vsyncpa [#allocation3], 0
    %9 = vsyncpa [#allocation6], 0
    %10 = vsyncpa [#allocation4], 0
    // Predicated region
    $region2: #{tpu_custom_call.1} parent=1 // pred_check
      _
    $region3: #{tpu_custom_call.1} parent=1 // pred_check_branch
      %12 = sbr.rel (0) target = $region5
    $region4: #{tpu_custom_call.1} parent=1 // pred_region
      %s14 = ssub.s32 64, 64
      %15 = vsyncadd [#allocation3], %s14
      %s17 = sshll.u32 [#allocation2], 4
      %s18 = int_to_ptr.vmem [resolvable:$true] %s17
      %20 = dma.hbm_to_vmem [thread:$0]  %s0, 64, %s18, [#allocation3]
    $region5: #{tpu_custom_call.1} parent=1 // pred_fallthru
      _
    // Predicated region
    $region6: #{tpu_custom_call.1} parent=1 // pred_check
      _
    $region7: #{tpu_custom_call.1} parent=1 // pred_check_branch
      %22 = sbr.rel (0) target = $region9
    $region8: #{tpu_custom_call.1} parent=1 // pred_region
      %s24 = ssub.s32 8192, 8192
      %25 = vsyncadd [#allocation6], %s24
      %s26 = sshll.u32 [#allocation5], 4
      %s27 = int_to_ptr.vmem [resolvable:$true] %s26
      %32 = dma.hbm_to_vmem [thread:$0]  %s1, 8192, %s27, [#allocation6], 256, 256, 16
    $region9: #{tpu_custom_call.1} parent=1 // pred_fallthru
      _
    // Predicated region
    $region10: #{tpu_custom_call.1} parent=1 // pred_check
      _
    $region11: #{tpu_custom_call.1} parent=1 // pred_check_branch
      %34 = sbr.rel (0) target = $region13
    $region12: #{tpu_custom_call.1} parent=1 // pred_region
      %s36 = ssub.s32 64, 64
      %37 = vsyncadd [#allocation6], %s36
      %s39 = sshll.u32 [#allocation7], 4
      %s40 = int_to_ptr.vmem [resolvable:$true] %s39
      %42 = dma.hbm_to_vmem [thread:$0]  %s2, 64, %s40, [#allocation6]
    $region13: #{tpu_custom_call.1} parent=1 // pred_fallthru
      _
    // Predicated region
    $region14: #{tpu_custom_call.1} parent=1 // pred_check
      _
    $region15: #{tpu_custom_call.1} parent=1 // pred_check_branch
      %44 = sbr.rel (0) target = $region17
    $region16: #{tpu_custom_call.1} parent=1 // pred_region
      %45 = dma.done [#allocation3], 64
    $region17: #{tpu_custom_call.1} parent=1 // pred_fallthru
      _
    // Predicated region
    $region18: #{tpu_custom_call.1} parent=1 // pred_check
      _
    $region19: #{tpu_custom_call.1} parent=1 // pred_check_branch
      %47 = sbr.rel (0) target = $region21
    $region20: #{tpu_custom_call.1} parent=1 // pred_region
      %48 = dma.done [#allocation6], 8192
    $region21: #{tpu_custom_call.1} parent=1 // pred_fallthru
      _
    // Predicated region
    $region22: #{tpu_custom_call.1} parent=1 // pred_check
      _
    $region23: #{tpu_custom_call.1} parent=1 // pred_check_branch
      %50 = sbr.rel (0) target = $region25
    $region24: #{tpu_custom_call.1} parent=1 // pred_region
      %51 = dma.done [#allocation6], 64
    $region25: #{tpu_custom_call.1} parent=1 // pred_fallthru
      _
    %v52 = vld [vmem:[#allocation2] sm:$0xf]
    %v53 = vxor.u32 %v52, 2147483648
    %v54 = vmul.f32 %v53, 1.442695
    %v55 = vpow.pop %v54
    %v56 = vadd.f32 %v55, 1.0
    %v57 = vrcp.pop %v56
    %v58 = vmul.f32 1.0, %v57
    %v59 = vmul.f32 %v52, %v58
    %v62 = vunpack.c.l.s4 1983009808
    %v63 = vunpack.c.0.s8 %v62
    %v64 = vlaneseq
    %v65 = vshrl.u32 %v64, 7
    %v66 = vsub.s32 %v63, %v65
    %v67 = vrot.slane %v59, %v66
    %v68 = vcombine.high %v67, %v67
    %v71 = vpack.c.bf16 %v67, %v67
    %v72 = vpack.c.bf16 %v68, %v68
    %v73 = vld [vmem:[#allocation5] sm:$0xff]
    %v74 = vld [vmem:[#allocation5 + $0x8] sm:$0xff]
    %v75 = vld [vmem:[#allocation5 + $0x10] sm:$0xff]
    %v76 = vld [vmem:[#allocation5 + $0x18] sm:$0xff]
    %v77 = vld [vmem:[#allocation5 + $0x20] sm:$0xff]
    %v78 = vld [vmem:[#allocation5 + $0x28] sm:$0xff]
    %v79 = vld [vmem:[#allocation5 + $0x30] sm:$0xff]
    %v80 = vld [vmem:[#allocation5 + $0x38] sm:$0xff]
    %v81 = vld [vmem:[#allocation5 + $0x40] sm:$0xff]
    %v82 = vld [vmem:[#allocation5 + $0x48] sm:$0xff]
    %v83 = vld [vmem:[#allocation5 + $0x50] sm:$0xff]
    %v84 = vld [vmem:[#allocation5 + $0x58] sm:$0xff]
    %v85 = vld [vmem:[#allocation5 + $0x60] sm:$0xff]
    %v86 = vld [vmem:[#allocation5 + $0x68] sm:$0xff]
    %v87 = vld [vmem:[#allocation5 + $0x70] sm:$0xff]
    %v88 = vld [vmem:[#allocation5 + $0x78] sm:$0xff]
    %v89 = vld [vmem:[#allocation5 + $0x80] sm:$0xff]
    %v90 = vld [vmem:[#allocation5 + $0x88] sm:$0xff]
    %v91 = vld [vmem:[#allocation5 + $0x90] sm:$0xff]
    %v92 = vld [vmem:[#allocation5 + $0x98] sm:$0xff]
    %v93 = vld [vmem:[#allocation5 + $0xa0] sm:$0xff]
    %v94 = vld [vmem:[#allocation5 + $0xa8] sm:$0xff]
    %v95 = vld [vmem:[#allocation5 + $0xb0] sm:$0xff]
    %v96 = vld [vmem:[#allocation5 + $0xb8] sm:$0xff]
    %v97 = vld [vmem:[#allocation5 + $0xc0] sm:$0xff]
    %v98 = vld [vmem:[#allocation5 + $0xc8] sm:$0xff]
    %v99 = vld [vmem:[#allocation5 + $0xd0] sm:$0xff]
    %v100 = vld [vmem:[#allocation5 + $0xd8] sm:$0xff]
    %v101 = vld [vmem:[#allocation5 + $0xe0] sm:$0xff]
    %v102 = vld [vmem:[#allocation5 + $0xe8] sm:$0xff]
    %v103 = vld [vmem:[#allocation5 + $0xf0] sm:$0xff]
    %v104 = vld [vmem:[#allocation5 + $0xf8] sm:$0xff]
    %v105 = vld [vmem:[#allocation5 + $0x100] sm:$0xff]
    %v106 = vld [vmem:[#allocation5 + $0x108] sm:$0xff]
    %v107 = vld [vmem:[#allocation5 + $0x110] sm:$0xff]
    %v108 = vld [vmem:[#allocation5 + $0x118] sm:$0xff]
    %v109 = vld [vmem:[#allocation5 + $0x120] sm:$0xff]
    %v110 = vld [vmem:[#allocation5 + $0x128] sm:$0xff]
    %v111 = vld [vmem:[#allocation5 + $0x130] sm:$0xff]
    %v112 = vld [vmem:[#allocation5 + $0x138] sm:$0xff]
    %v113 = vld [vmem:[#allocation5 + $0x140] sm:$0xff]
    %v114 = vld [vmem:[#allocation5 + $0x148] sm:$0xff]
    %v115 = vld [vmem:[#allocation5 + $0x150] sm:$0xff]
    %v116 = vld [vmem:[#allocation5 + $0x158] sm:$0xff]
    %v117 = vld [vmem:[#allocation5 + $0x160] sm:$0xff]
    %v118 = vld [vmem:[#allocation5 + $0x168] sm:$0xff]
    %v119 = vld [vmem:[#allocation5 + $0x170] sm:$0xff]
    %v120 = vld [vmem:[#allocation5 + $0x178] sm:$0xff]
    %v121 = vld [vmem:[#allocation5 + $0x180] sm:$0xff]
    %v122 = vld [vmem:[#allocation5 + $0x188] sm:$0xff]
    %v123 = vld [vmem:[#allocation5 + $0x190] sm:$0xff]
    %v124 = vld [vmem:[#allocation5 + $0x198] sm:$0xff]
    %v125 = vld [vmem:[#allocation5 + $0x1a0] sm:$0xff]
    %v126 = vld [vmem:[#allocation5 + $0x1a8] sm:$0xff]
    %v127 = vld [vmem:[#allocation5 + $0x1b0] sm:$0xff]
    %v128 = vld [vmem:[#allocation5 + $0x1b8] sm:$0xff]
    %v129 = vld [vmem:[#allocation5 + $0x1c0] sm:$0xff]
    %v130 = vld [vmem:[#allocation5 + $0x1c8] sm:$0xff]
    %v131 = vld [vmem:[#allocation5 + $0x1d0] sm:$0xff]
    %v132 = vld [vmem:[#allocation5 + $0x1d8] sm:$0xff]
    %v133 = vld [vmem:[#allocation5 + $0x1e0] sm:$0xff]
    %v134 = vld [vmem:[#allocation5 + $0x1e8] sm:$0xff]
    %v135 = vld [vmem:[#allocation5 + $0x1f0] sm:$0xff]
    %v136 = vld [vmem:[#allocation5 + $0x1f8] sm:$0xff]
    %v137 = vld [vmem:[#allocation7] sm:$0xf]
    %v139 = vlaneseq
    %v140 = vshrl.u32 %v139, 7
    %v141 = vsub.s32 0, %v140
    %v142 = vrot.slane %v137, %v141
    %v143 = vlaneseq
    %v144 = vshrl.u32 %v143, 7
    %v145 = vsub.s32 1, %v144
    %v146 = vrot.slane %v137, %v145
    %v147 = vlaneseq
    %v148 = vshrl.u32 %v147, 7
    %v149 = vsub.s32 2, %v148
    %v150 = vrot.slane %v137, %v149
    %v151 = vlaneseq
    %v152 = vshrl.u32 %v151, 7
    %v153 = vsub.s32 3, %v152
    %v154 = vrot.slane %v137, %v153
    %v223 = vunpack.c.l.b16 %v73
    %v224 = vunpack.c.h.b16 %v73
    %v225 = vunpack.c.l.b16 %v74
    %v226 = vunpack.c.h.b16 %v74
    %v227 = vunpack.c.l.b16 %v75
    %v228 = vunpack.c.h.b16 %v75
    %v229 = vunpack.c.l.b16 %v76
    %v230 = vunpack.c.h.b16 %v76
    %v231 = vunpack.c.l.b16 %v77
    %v232 = vunpack.c.h.b16 %v77
    %v233 = vunpack.c.l.b16 %v78
    %v234 = vunpack.c.h.b16 %v78
    %v235 = vunpack.c.l.b16 %v79
    %v236 = vunpack.c.h.b16 %v79
    %v237 = vunpack.c.l.b16 %v80
    %v238 = vunpack.c.h.b16 %v80
    %v239 = vunpack.c.l.b16 %v81
    %v240 = vunpack.c.h.b16 %v81
    %v241 = vunpack.c.l.b16 %v82
    %v242 = vunpack.c.h.b16 %v82
    %v243 = vunpack.c.l.b16 %v83
    %v244 = vunpack.c.h.b16 %v83
    %v245 = vunpack.c.l.b16 %v84
    %v246 = vunpack.c.h.b16 %v84
    %v247 = vunpack.c.l.b16 %v85
    %v248 = vunpack.c.h.b16 %v85
    %v249 = vunpack.c.l.b16 %v86
    %v250 = vunpack.c.h.b16 %v86
    %v251 = vunpack.c.l.b16 %v87
    %v252 = vunpack.c.h.b16 %v87
    %v253 = vunpack.c.l.b16 %v88
    %v254 = vunpack.c.h.b16 %v88
    %v255 = vunpack.c.l.b16 %v89
    %v256 = vunpack.c.h.b16 %v89
    %v257 = vunpack.c.l.b16 %v90
    %v258 = vunpack.c.h.b16 %v90
    %v259 = vunpack.c.l.b16 %v91
    %v260 = vunpack.c.h.b16 %v91
    %v261 = vunpack.c.l.b16 %v92
    %v262 = vunpack.c.h.b16 %v92
    %v263 = vunpack.c.l.b16 %v93
    %v264 = vunpack.c.h.b16 %v93
    %v265 = vunpack.c.l.b16 %v94
    %v266 = vunpack.c.h.b16 %v94
    %v267 = vunpack.c.l.b16 %v95
    %v268 = vunpack.c.h.b16 %v95
    %v269 = vunpack.c.l.b16 %v96
    %v270 = vunpack.c.h.b16 %v96
    %v271 = vunpack.c.l.b16 %v97
    %v272 = vunpack.c.h.b16 %v97
    %v273 = vunpack.c.l.b16 %v98
    %v274 = vunpack.c.h.b16 %v98
    %v275 = vunpack.c.l.b16 %v99
    %v276 = vunpack.c.h.b16 %v99
    %v277 = vunpack.c.l.b16 %v100
    %v278 = vunpack.c.h.b16 %v100
    %v279 = vunpack.c.l.b16 %v101
    %v280 = vunpack.c.h.b16 %v101
    %v281 = vunpack.c.l.b16 %v102
    %v282 = vunpack.c.h.b16 %v102
    %v283 = vunpack.c.l.b16 %v103
    %v284 = vunpack.c.h.b16 %v103
    %v285 = vunpack.c.l.b16 %v104
    %v286 = vunpack.c.h.b16 %v104
    %v287 = vunpack.c.l.b16 %v105
    %v288 = vunpack.c.h.b16 %v105
    %v289 = vunpack.c.l.b16 %v106
    %v290 = vunpack.c.h.b16 %v106
    %v291 = vunpack.c.l.b16 %v107
    %v292 = vunpack.c.h.b16 %v107
    %v293 = vunpack.c.l.b16 %v108
    %v294 = vunpack.c.h.b16 %v108
    %v295 = vunpack.c.l.b16 %v109
    %v296 = vunpack.c.h.b16 %v109
    %v297 = vunpack.c.l.b16 %v110
    %v298 = vunpack.c.h.b16 %v110
    %v299 = vunpack.c.l.b16 %v111
    %v300 = vunpack.c.h.b16 %v111
    %v301 = vunpack.c.l.b16 %v112
    %v302 = vunpack.c.h.b16 %v112
    %v303 = vunpack.c.l.b16 %v113
    %v304 = vunpack.c.h.b16 %v113
    %v305 = vunpack.c.l.b16 %v114
    %v306 = vunpack.c.h.b16 %v114
    %v307 = vunpack.c.l.b16 %v115
    %v308 = vunpack.c.h.b16 %v115
    %v309 = vunpack.c.l.b16 %v116
    %v310 = vunpack.c.h.b16 %v116
    %v311 = vunpack.c.l.b16 %v117
    %v312 = vunpack.c.h.b16 %v117
    %v313 = vunpack.c.l.b16 %v118
    %v314 = vunpack.c.h.b16 %v118
    %v315 = vunpack.c.l.b16 %v119
    %v316 = vunpack.c.h.b16 %v119
    %v317 = vunpack.c.l.b16 %v120
    %v318 = vunpack.c.h.b16 %v120
    %v319 = vunpack.c.l.b16 %v121
    %v320 = vunpack.c.h.b16 %v121
    %v321 = vunpack.c.l.b16 %v122
    %v322 = vunpack.c.h.b16 %v122
    %v323 = vunpack.c.l.b16 %v123
    %v324 = vunpack.c.h.b16 %v123
    %v325 = vunpack.c.l.b16 %v124
    %v326 = vunpack.c.h.b16 %v124
    %v327 = vunpack.c.l.b16 %v125
    %v328 = vunpack.c.h.b16 %v125
    %v329 = vunpack.c.l.b16 %v126
    %v330 = vunpack.c.h.b16 %v126
    %v331 = vunpack.c.l.b16 %v127
    %v332 = vunpack.c.h.b16 %v127
    %v333 = vunpack.c.l.b16 %v128
    %v334 = vunpack.c.h.b16 %v128
    %v335 = vunpack.c.l.b16 %v129
    %v336 = vunpack.c.h.b16 %v129
    %v337 = vunpack.c.l.b16 %v130
    %v338 = vunpack.c.h.b16 %v130
    %v339 = vunpack.c.l.b16 %v131
    %v340 = vunpack.c.h.b16 %v131
    %v341 = vunpack.c.l.b16 %v132
    %v342 = vunpack.c.h.b16 %v132
    %v343 = vunpack.c.l.b16 %v133
    %v344 = vunpack.c.h.b16 %v133
    %v345 = vunpack.c.l.b16 %v134
    %v346 = vunpack.c.h.b16 %v134
    %v347 = vunpack.c.l.b16 %v135
    %v348 = vunpack.c.h.b16 %v135
    %v349 = vunpack.c.l.b16 %v136
    %v350 = vunpack.c.h.b16 %v136
    %v351 = vpack.c.b16 %v227, %v223
    %v352 = vpack.c.b16 %v228, %v224
    %v353 = vpack.c.b16 %v229, %v225
    %v354 = vpack.c.b16 %v230, %v226
    %v355 = vpack.c.b16 %v235, %v231
    %v356 = vpack.c.b16 %v236, %v232
    %v357 = vpack.c.b16 %v237, %v233
    %v358 = vpack.c.b16 %v238, %v234
    %v359 = vpack.c.b16 %v243, %v239
    %v360 = vpack.c.b16 %v244, %v240
    %v361 = vpack.c.b16 %v245, %v241
    %v362 = vpack.c.b16 %v246, %v242
    %v363 = vpack.c.b16 %v251, %v247
    %v364 = vpack.c.b16 %v252, %v248
    %v365 = vpack.c.b16 %v253, %v249
    %v366 = vpack.c.b16 %v254, %v250
    %v367 = vpack.c.b16 %v259, %v255
    %v368 = vpack.c.b16 %v260, %v256
    %v369 = vpack.c.b16 %v261, %v257
    %v370 = vpack.c.b16 %v262, %v258
    %v371 = vpack.c.b16 %v267, %v263
    %v372 = vpack.c.b16 %v268, %v264
    %v373 = vpack.c.b16 %v269, %v265
    %v374 = vpack.c.b16 %v270, %v266
    %v375 = vpack.c.b16 %v275, %v271
    %v376 = vpack.c.b16 %v276, %v272
    %v377 = vpack.c.b16 %v277, %v273
    %v378 = vpack.c.b16 %v278, %v274
    %v379 = vpack.c.b16 %v283, %v279
    %v380 = vpack.c.b16 %v284, %v280
    %v381 = vpack.c.b16 %v285, %v281
    %v382 = vpack.c.b16 %v286, %v282
    %v383 = vpack.c.b16 %v291, %v287
    %v384 = vpack.c.b16 %v292, %v288
    %v385 = vpack.c.b16 %v293, %v289
    %v386 = vpack.c.b16 %v294, %v290
    %v387 = vpack.c.b16 %v299, %v295
    %v388 = vpack.c.b16 %v300, %v296
    %v389 = vpack.c.b16 %v301, %v297
    %v390 = vpack.c.b16 %v302, %v298
    %v391 = vpack.c.b16 %v307, %v303
    %v392 = vpack.c.b16 %v308, %v304
    %v393 = vpack.c.b16 %v309, %v305
    %v394 = vpack.c.b16 %v310, %v306
    %v395 = vpack.c.b16 %v315, %v311
    %v396 = vpack.c.b16 %v316, %v312
    %v397 = vpack.c.b16 %v317, %v313
    %v398 = vpack.c.b16 %v318, %v314
    %v399 = vpack.c.b16 %v323, %v319
    %v400 = vpack.c.b16 %v324, %v320
    %v401 = vpack.c.b16 %v325, %v321
    %v402 = vpack.c.b16 %v326, %v322
    %v403 = vpack.c.b16 %v331, %v327
    %v404 = vpack.c.b16 %v332, %v328
    %v405 = vpack.c.b16 %v333, %v329
    %v406 = vpack.c.b16 %v334, %v330
    %v407 = vpack.c.b16 %v339, %v335
    %v408 = vpack.c.b16 %v340, %v336
    %v409 = vpack.c.b16 %v341, %v337
    %v410 = vpack.c.b16 %v342, %v338
    %v411 = vpack.c.b16 %v347, %v343
    %v412 = vpack.c.b16 %v348, %v344
    %v413 = vpack.c.b16 %v349, %v345
    %v414 = vpack.c.b16 %v350, %v346
    %479 = vmatprep.subr.bf16.mxu0 %v380
    %480 = vmatpush1.bf16.msra.mxu0 %v379
    %481 = vmatprep.subr.bf16.mxu0 %v376
    %482 = vmatpush1.bf16.msra.mxu0 %v375
    %483 = vmatprep.subr.bf16.mxu0 %v372
    %484 = vmatpush1.bf16.msra.mxu0 %v371
    %485 = vmatprep.subr.bf16.mxu0 %v368
    %486 = vmatpush1.bf16.msra.mxu0 %v367
    %487 = vmatprep.subr.bf16.mxu0 %v364
    %488 = vmatpush1.bf16.msra.mxu0 %v363
    %489 = vmatprep.subr.bf16.mxu0 %v360
    %490 = vmatpush1.bf16.msra.mxu0 %v359
    %491 = vmatprep.subr.bf16.mxu0 %v356
    %492 = vmatpush1.bf16.msra.mxu0 %v355
    %493 = vmatprep.subr.bf16.mxu0 %v352
    %494 = vmatpush1.bf16.msra.mxu0 %v351
    %495 = vmatprep.subr.bf16.mxu0 %v412
    %496 = vmatpush2.bf16.msra.mxu0 %v411
    %497 = vmatprep.subr.bf16.mxu0 %v408
    %498 = vmatpush2.bf16.msra.mxu0 %v407
    %499 = vmatprep.subr.bf16.mxu0 %v404
    %500 = vmatpush2.bf16.msra.mxu0 %v403
    %501 = vmatprep.subr.bf16.mxu0 %v400
    %502 = vmatpush2.bf16.msra.mxu0 %v399
    %503 = vmatprep.subr.bf16.mxu0 %v396
    %504 = vmatpush2.bf16.msra.mxu0 %v395
    %505 = vmatprep.subr.bf16.mxu0 %v392
    %506 = vmatpush2.bf16.msra.mxu0 %v391
    %507 = vmatprep.subr.bf16.mxu0 %v388
    %508 = vmatpush2.bf16.msra.mxu0 %v387
    %509 = vmatprep.subr.bf16.mxu0 %v384
    %510 = vmatpush2.bf16.msra.mxu0 %v383
    %511 = vmatprep.mubr.bf16.mxu0 %v72
    %512 = vmatmul.mubr.bf16.gmra.mxu0 %v71
    %v513 = vpop.f32.mrf.mxu0
    %v514 = vadd.f32 %v142, %v513
    %v515 = vpop.f32.mrf.mxu0
    %v516 = vadd.f32 %v146, %v515
    %v517 = vpop.f32.mrf.mxu0
    %v518 = vpop.f32.mrf.mxu0
    %519 = vdwg.mxu0
    %520 = vmatprep.subr.bf16.mxu0 %v382
    %521 = vmatpush1.bf16.msra.mxu0 %v381
    %522 = vmatprep.subr.bf16.mxu0 %v378
    %523 = vmatpush1.bf16.msra.mxu0 %v377
    %524 = vmatprep.subr.bf16.mxu0 %v374
    %525 = vmatpush1.bf16.msra.mxu0 %v373
    %526 = vmatprep.subr.bf16.mxu0 %v370
    %527 = vmatpush1.bf16.msra.mxu0 %v369
    %528 = vmatprep.subr.bf16.mxu0 %v366
    %529 = vmatpush1.bf16.msra.mxu0 %v365
    %530 = vmatprep.subr.bf16.mxu0 %v362
    %531 = vmatpush1.bf16.msra.mxu0 %v361
    %532 = vmatprep.subr.bf16.mxu0 %v358
    %533 = vmatpush1.bf16.msra.mxu0 %v357
    %534 = vmatprep.subr.bf16.mxu0 %v354
    %535 = vmatpush1.bf16.msra.mxu0 %v353
    %536 = vmatprep.subr.bf16.mxu0 %v414
    %537 = vmatpush2.bf16.msra.mxu0 %v413
    %538 = vmatprep.subr.bf16.mxu0 %v410
    %539 = vmatpush2.bf16.msra.mxu0 %v409
    %540 = vmatprep.subr.bf16.mxu0 %v406
    %541 = vmatpush2.bf16.msra.mxu0 %v405
    %542 = vmatprep.subr.bf16.mxu0 %v402
    %543 = vmatpush2.bf16.msra.mxu0 %v401
    %544 = vmatprep.subr.bf16.mxu0 %v398
    %545 = vmatpush2.bf16.msra.mxu0 %v397
    %546 = vmatprep.subr.bf16.mxu0 %v394
    %547 = vmatpush2.bf16.msra.mxu0 %v393
    %548 = vmatprep.subr.bf16.mxu0 %v390
    %549 = vmatpush2.bf16.msra.mxu0 %v389
    %550 = vmatprep.subr.bf16.mxu0 %v386
    %551 = vmatpush2.bf16.msra.mxu0 %v385
    %552 = vmatprep.mubr.bf16.mxu0 %v72
    %553 = vmatmul.mubr.bf16.gmra.mxu0 %v71
    %v554 = vpop.f32.mrf.mxu0
    %v555 = vadd.f32 %v150, %v554
    %v556 = vpop.f32.mrf.mxu0
    %v557 = vadd.f32 %v154, %v556
    %v558 = vpop.f32.mrf.mxu0
    %v559 = vpop.f32.mrf.mxu0
    %560 = vdwg.mxu0
    %v565 = vcombine.low %v514, %v516
    %v566 = vcombine.low %v555, %v557
    %v568 = vunpack.c.l.s4 1983009808
    %v569 = vunpack.c.0.s8 %v568
    %v570 = vlaneseq
    %v571 = vshrl.u32 %v570, 7
    %v572 = vsub.s32 %v569, %v571
    %v573 = vrot.slane %v565, %v572
    %v575 = vunpack.c.l.s4 1983009808
    %v576 = vunpack.c.0.s8 %v575
    %v577 = vlaneseq
    %v578 = vshrl.u32 %v577, 7
    %v579 = vsub.s32 %v576, %v578
    %v580 = vrot.slane %v566, %v579
    %v581 = vcombine.low %v573, %v580
    %583 = vst [vmem:[#allocation8] sm:$0xff] %v581
    // Predicated region
    $region26: #{tpu_custom_call.1} parent=1 // pred_check
      _
    $region27: #{tpu_custom_call.1} parent=1 // pred_check_branch
      %585 = sbr.rel (0) target = $region29
    $region28: #{tpu_custom_call.1} parent=1 // pred_region
      %s587 = ssub.s32 128, 128
      %588 = vsyncadd [#allocation4], %s587
      %s590 = sshll.u32 [#allocation8], 4
      %s591 = int_to_ptr.vmem [resolvable:$true] %s590
      %593 = dma.vmem_to_hbm [thread:$0]  %s591, 128, %s3, [#allocation4]
    $region29: #{tpu_custom_call.1} parent=1 // pred_fallthru
      _
    // Predicated region
    $region30: #{tpu_custom_call.1} parent=1 // pred_check
      _
    $region31: #{tpu_custom_call.1} parent=1 // pred_check_branch
      %595 = sbr.rel (0) target = $region33
    $region32: #{tpu_custom_call.1} parent=1 // pred_region
      %596 = dma.done [#allocation4], 128
    $region33: #{tpu_custom_call.1} parent=1 // pred_fallthru
      _
    %597 = vsyncpa [#allocation3], 1
    %598 = vsyncpa [#allocation6], 1
    %599 = vsyncpa [#allocation4], 1

</llo_original>
